<compile_context>
chip_gen: v7x
topology: tpu7x:2x2x1
jax: 0.10.0
libtpu: 0.0.40
codegen_flags: <defaults>
</compile_context>

<pallas_src>
import math

import jax
import jax.numpy as jnp
from jax.experimental import pallas as pl
from jax.experimental.pallas import tpu as pltpu

K_IN = 16              # Linear in_features
N_OUT = 32             # Linear out_features
FOLD = 8               # rows folded into lanes (input 128 lanes, output 256 lanes)
MAX_TM_FOLDED = 4096   # max folded rows per grid step (= 32768 original rows)

C_SQRT_2_OVER_PI = 0.7978845608028654
C_CUBIC = 0.044715 * 0.7978845608028654   # folded constant for the cubic term


def _round_up(x, m):
    return -(-x // m) * m


def _gelu_linear_kernel(x_ref, w_ref, b_ref, o_ref):
    # x_ref: (TMf, FOLD*K_IN); w_ref: (FOLD*K_IN, FOLD*N_OUT) block-diagonal;
    # b_ref: (1, FOLD*N_OUT); o_ref: (TMf, FOLD*N_OUT).
    v1 = jnp.dot(x_ref[...], w_ref[...],
                 preferred_element_type=jnp.float32) + b_ref[...]
    # Trimmed tanh-GELU (reassociated but same math as the PyTorch module):
    #   inner = sqrt(2/pi) * (v1 + 0.044715 * v1^3) = v1 * (c1 + c2 * v1*v1)
    #   out   = 0.5 * v1 * (1 + tanh(inner))        = v1 * (0.5 + 0.5*tanh(inner))
    t = v1 * v1
    inner = v1 * (C_SQRT_2_OVER_PI + C_CUBIC * t)
    o_ref[...] = (v1 * (0.5 + 0.5 * jnp.tanh(inner))).astype(o_ref.dtype)


def fold_params(w, b, dtype=jnp.float32):
    """Precompute folded params ONCE.

    w: (32, 16) torch (out, in) layout; b: (32,).
    Returns block-diagonal weight (128, 256) and tiled bias (1, 256).
    """
    w_t = w.T.astype(dtype)                                    # (16, 32)
    w_bd = jnp.kron(jnp.eye(FOLD, dtype=dtype), w_t)           # (128, 256) block-diag
    b_tiled = jnp.tile(b.astype(dtype), FOLD).reshape(1, FOLD * N_OUT)
    return w_bd, b_tiled


@jax.jit
def gelu_linear(x, w_bd, b_tiled):
    """x: (..., 16) f32; w_bd/b_tiled from fold_params. Returns (..., 32)."""
    assert x.shape[-1] == K_IN
    lead = x.shape[:-1]
    m = int(math.prod(lead)) if lead else 1
    dtype = x.dtype

    # Fold 8 rows into lanes; pad M only to a multiple of FOLD*8 = 64 rows
    # (not to a full tile), so large aligned M never pays a pad/copy.
    mf = -(-m // FOLD)
    mf_pad = _round_up(max(mf, 1), 8)
    m_pad = mf_pad * FOLD

    x2d = x.reshape(m, K_IN)
    if m_pad > m:
        x2d = jnp.concatenate(
            [x2d, jnp.zeros((m_pad - m, K_IN), dtype)], axis=0)
    x_folded = x2d.reshape(mf_pad, FOLD * K_IN)                # contiguous view

    # M tile: as large as safely fits VMEM everywhere; keep >=~4 grid steps
    # for pipelining when M is very large.  Partial last blocks are handled
    # by Pallas (out-of-range output rows are dropped on writeback).
    if mf_pad <= MAX_TM_FOLDED:
        tmf = mf_pad
    else:
        tmf = min(MAX_TM_FOLDED, _round_up(-(-mf_pad // 4), 8))
    grid = (-(-mf_pad // tmf),)

    cost = pl.CostEstimate(
        flops=2 * mf_pad * (FOLD * K_IN) * (FOLD * N_OUT)
              + 6 * mf_pad * FOLD * N_OUT,
        transcendentals=mf_pad * FOLD * N_OUT,
        bytes_accessed=4 * (mf_pad * FOLD * K_IN            # x (padded/folded)
                            + mf_pad * FOLD * N_OUT         # y
                            + FOLD * K_IN * FOLD * N_OUT    # block-diag weight
                            + FOLD * N_OUT),                # bias
    )

    out_folded = pl.pallas_call(
        _gelu_linear_kernel,
        out_shape=jax.ShapeDtypeStruct((mf_pad, FOLD * N_OUT), dtype),
        grid=grid,
        in_specs=[
            pl.BlockSpec((tmf, FOLD * K_IN), lambda i: (i, 0)),
            # weight / bias: constant index_map -> stay VMEM-resident.
            pl.BlockSpec((FOLD * K_IN, FOLD * N_OUT), lambda i: (0, 0)),
            pl.BlockSpec((1, FOLD * N_OUT), lambda i: (0, 0)),
        ],
        out_specs=pl.BlockSpec((tmf, FOLD * N_OUT), lambda i: (i, 0)),
        compiler_params=pltpu.CompilerParams(
            dimension_semantics=("parallel",),
            vmem_limit_bytes=48 * 1024 * 1024,   # safe on v5e/v6e (128 MiB) and v7x (64 MiB)
        ),
        cost_estimate=cost,
    )(x_folded, w_bd, b_tiled)

    out2d = out_folded.reshape(m_pad, N_OUT)
    if m_pad > m:
        out2d = out2d[:m]                                       # drop padded rows
    return out2d.reshape(*lead, N_OUT)


if __name__ == "__main__":
    key = jax.random.PRNGKey(0)
    kx, kw, kb = jax.random.split(key, 3)

    # Small shapes consistent with the module: Linear(16, 32) on the last dim
    # of a 4-D input.
    B, C, H, K = 2, 4, 16, 16
    N = 32

    x = jax.random.normal(kx, (B, C, H, K), dtype=jnp.float32)

    # PyTorch-style uniform(-1/sqrt(K), 1/sqrt(K)) init, torch (out, in) layout.
    bound = 1.0 / jnp.sqrt(jnp.float32(K))
    w = jax.random.uniform(kw, (N, K), dtype=jnp.float32,
                           minval=-bound, maxval=bound)
    b = jax.random.uniform(kb, (N,), dtype=jnp.float32,
                           minval=-bound, maxval=bound)

    # Folded params built once (module-init analogue), outside the hot path.
    w_bd, b_tiled = fold_params(w, b)

    out = gelu_linear(x, w_bd, b_tiled)
    out = jax.block_until_ready(out)

    # Pure-JAX reference with the exact PyTorch formula.
    v1 = jnp.einsum("bchk,nk->bchn", x, w) + b
    ref = (v1 * 0.5) * (jnp.tanh((v1 + v1 * v1 * v1 * 0.044715)
                                 * 0.7978845608028654) + 1.0)
    assert out.shape == (B, C, H, N)
    assert jnp.allclose(out, ref, atol=1e-5, rtol=1e-5)

    print("KERNEL_OK")
</pallas_src>

<mosaic_0001>
module attributes {stable_mosaic.version = 11 : i64} {
  func.func @_gelu_linear_kernel(%arg0: i32, %arg1: memref<16x128xf32, #tpu.memory_space<vmem>>, %arg2: memref<128x256xf32, #tpu.memory_space<vmem>>, %arg3: memref<1x256xf32, #tpu.memory_space<vmem>>, %arg4: memref<16x256xf32, #tpu.memory_space<vmem>>) attributes {dimension_semantics = [#tpu.dimension_semantics<parallel>], iteration_bounds = array<i64: 1>, scalar_prefetch = 0 : i64, scratch_operands = 0 : i64, tpu.core_type = #tpu.core_type<tc>, window_params = [{transform_indices = @transform_0, window_bounds = array<i64: 16, 128>}, {pipeline_mode = #tpu.pipeline_mode<synchronous>, transform_indices = @transform_1, window_bounds = array<i64: 128, 256>}, {pipeline_mode = #tpu.pipeline_mode<synchronous>, transform_indices = @transform_2, window_bounds = array<i64: 1, 256>}, {transform_indices = @transform_3, window_bounds = array<i64: 16, 256>}]} {
    %c0 = arith.constant 0 : index
    %c0_0 = arith.constant 0 : index
    %0 = vector.load %arg1[%c0, %c0_0] : memref<16x128xf32, #tpu.memory_space<vmem>>, vector<16x128xf32>
    %c0_1 = arith.constant 0 : index
    %c0_2 = arith.constant 0 : index
    %1 = vector.load %arg2[%c0_1, %c0_2] : memref<128x256xf32, #tpu.memory_space<vmem>>, vector<128x256xf32>
    %cst = arith.constant dense<0.000000e+00> : vector<16x256xf32>
    %2 = tpu.matmul %0, %1, %cst {dimension_numbers = #tpu.dot_dimension_numbers<[1], [0], [0], [1], [0, 0, 1, 1], [], []>} : vector<16x128xf32>, vector<128x256xf32>, vector<16x256xf32> -> vector<16x256xf32>
    %c0_3 = arith.constant 0 : index
    %c0_4 = arith.constant 0 : index
    %3 = vector.load %arg3[%c0_3, %c0_4] : memref<1x256xf32, #tpu.memory_space<vmem>>, vector<1x256xf32>
    %4 = vector.broadcast %3 : vector<1x256xf32> to vector<16x256xf32>
    %5 = arith.addf %2, %4 : vector<16x256xf32>
    %6 = arith.mulf %5, %5 : vector<16x256xf32>
    %cst_5 = arith.constant 0.0356774069 : f32
    %7 = vector.broadcast %cst_5 : f32 to vector<16x256xf32>
    %8 = arith.mulf %7, %6 : vector<16x256xf32>
    %cst_6 = arith.constant 0.797884583 : f32
    %9 = vector.broadcast %cst_6 : f32 to vector<16x256xf32>
    %10 = arith.addf %9, %8 : vector<16x256xf32>
    %11 = arith.mulf %5, %10 : vector<16x256xf32>
    %12 = math.tanh %11 : vector<16x256xf32>
    %cst_7 = arith.constant 5.000000e-01 : f32
    %13 = vector.broadcast %cst_7 : f32 to vector<16x256xf32>
    %14 = arith.mulf %13, %12 : vector<16x256xf32>
    %cst_8 = arith.constant 5.000000e-01 : f32
    %15 = vector.broadcast %cst_8 : f32 to vector<16x256xf32>
    %16 = arith.addf %15, %14 : vector<16x256xf32>
    %17 = arith.mulf %5, %16 : vector<16x256xf32>
    %c0_9 = arith.constant 0 : index
    %c0_10 = arith.constant 0 : index
    %18 = vector.load %arg4[%c0_9, %c0_10] : memref<16x256xf32, #tpu.memory_space<vmem>>, vector<16x256xf32>
    tpu.vector_store %arg4[%c0_9, %c0_10], %17 {strides = array<i32>} : memref<16x256xf32, #tpu.memory_space<vmem>>, vector<16x256xf32>,
    return
  }
  func.func @transform_0(%arg0: i32) -> (i32, i32) {
    %c0_i32 = arith.constant 0 : i32
    %c0_i32_0 = arith.constant 0 : i32
    return %arg0, %c0_i32 : i32, i32
  }
  func.func @transform_1(%arg0: i32) -> (i32, i32) {
    %c0_i32 = arith.constant 0 : i32
    %c0_i32_0 = arith.constant 0 : i32
    %c0_i32_1 = arith.constant 0 : i32
    return %c0_i32, %c0_i32_0 : i32, i32
  }
  func.func @transform_2(%arg0: i32) -> (i32, i32) {
    %c0_i32 = arith.constant 0 : i32
    %c0_i32_0 = arith.constant 0 : i32
    %c0_i32_1 = arith.constant 0 : i32
    return %c0_i32, %c0_i32_0 : i32, i32
  }
  func.func @transform_3(%arg0: i32) -> (i32, i32) {
    %c0_i32 = arith.constant 0 : i32
    %c0_i32_0 = arith.constant 0 : i32
    return %arg0, %c0_i32 : i32, i32
  }
}

</mosaic_0001>

<llo_original>
// kernel: gelu_linear.1
$region0: #{gelu_linear.1}
  #allocation0 [shape = 'u32[]', space=smem, size = 0x4, offset = 0x4, fixed_abs, tag = 'smem constant byte address 0x4 - core index']
  #allocation1 [shape = 'u32[144,128]{1,0:T(1,128)}', space=vmem, size = 0x12000, scoped, tag = 'internal scratch']
  %s0 = inlined_call_operand.vmem [shape: f32[16,128], index: 0, kind: input, shape index: {}]
  %s1 = inlined_call_operand.hbm [shape: f32[128,256], index: 1, kind: input, shape index: {}]
  %s2 = inlined_call_operand.vmem [shape: f32[1,256], index: 2, kind: input, shape index: {}]
  %s3 = inlined_call_operand.vmem [shape: f32[16,256], index: 3, kind: output, shape index: {}]
  %s4 = sld [smem:[#allocation0]]
  $region26: #{gelu_linear.1} parent=0
    _
  %s6 = ssub.s32 1, %s4
  %s7 = scalar_select 0, %s6, %s4
  $region1: #{gelu_linear.1} parent=0
    #allocation2 [shape = 'u8[131072]{0}', space=vmem, size = 0x20000, scoped, tag = 'input window, operand 1, single buffered']
    #allocation3 [shape = 's32[1]{0}', space=sflag, size = 0x4, scoped, tag = 'scoped memory for gelu_linear.1']
    %8 = vsyncpa [#allocation3], 0
    // Predicated region
    $region2: #{gelu_linear.1} parent=1 // pred_check
      _
    $region3: #{gelu_linear.1} parent=1 // pred_check_branch
      %10 = sbr.rel (0) target = $region5
    $region4: #{gelu_linear.1} parent=1 // pred_region
      _
    $region5: #{gelu_linear.1} parent=1 // pred_fallthru
      _
    // Predicated region
    $region6: #{gelu_linear.1} parent=1 // pred_check
      _
    $region7: #{gelu_linear.1} parent=1 // pred_check_branch
      %12 = sbr.rel (0) target = $region9
    $region8: #{gelu_linear.1} parent=1 // pred_region
      %s14 = ssub.s32 4096, 4096
      %15 = vsyncadd [#allocation3], %s14
      %s16 = sshll.u32 [#allocation2], 4
      %s17 = int_to_ptr.vmem [resolvable:$true] %s16
      %22 = dma.hbm_to_vmem [thread:$0]  %s1, 4096, %s17, [#allocation3], 256, 256, 16
    $region9: #{gelu_linear.1} parent=1 // pred_fallthru
      _
    // Predicated region
    $region10: #{gelu_linear.1} parent=1 // pred_check
      _
    $region11: #{gelu_linear.1} parent=1 // pred_check_branch
      %24 = sbr.rel (0) target = $region13
    $region12: #{gelu_linear.1} parent=1 // pred_region
      _
    $region13: #{gelu_linear.1} parent=1 // pred_fallthru
      _
    // Predicated region
    $region14: #{gelu_linear.1} parent=1 // pred_check
      _
    $region15: #{gelu_linear.1} parent=1 // pred_check_branch
      %26 = sbr.rel (0) target = $region17
    $region16: #{gelu_linear.1} parent=1 // pred_region
      %27 = dma.done [#allocation3], 4096
    $region17: #{gelu_linear.1} parent=1 // pred_fallthru
      _
    %v28 = vld [vmem:[%s0] sm:$0xff]
    %v29 = vld [vmem:[%s0 + $0x8] sm:$0xff]
    %v30 = vld [vmem:[#allocation2] sm:$0xff]
    %v31 = vld [vmem:[#allocation2 + $0x8] sm:$0xff]
    %v32 = vld [vmem:[#allocation2 + $0x10] sm:$0xff]
    %v33 = vld [vmem:[#allocation2 + $0x18] sm:$0xff]
    %v34 = vld [vmem:[#allocation2 + $0x20] sm:$0xff]
    %v35 = vld [vmem:[#allocation2 + $0x28] sm:$0xff]
    %v36 = vld [vmem:[#allocation2 + $0x30] sm:$0xff]
    %v37 = vld [vmem:[#allocation2 + $0x38] sm:$0xff]
    %v38 = vld [vmem:[#allocation2 + $0x40] sm:$0xff]
    %v39 = vld [vmem:[#allocation2 + $0x48] sm:$0xff]
    %v40 = vld [vmem:[#allocation2 + $0x50] sm:$0xff]
    %v41 = vld [vmem:[#allocation2 + $0x58] sm:$0xff]
    %v42 = vld [vmem:[#allocation2 + $0x60] sm:$0xff]
    %v43 = vld [vmem:[#allocation2 + $0x68] sm:$0xff]
    %v44 = vld [vmem:[#allocation2 + $0x70] sm:$0xff]
    %v45 = vld [vmem:[#allocation2 + $0x78] sm:$0xff]
    %v46 = vld [vmem:[#allocation2 + $0x80] sm:$0xff]
    %v47 = vld [vmem:[#allocation2 + $0x88] sm:$0xff]
    %v48 = vld [vmem:[#allocation2 + $0x90] sm:$0xff]
    %v49 = vld [vmem:[#allocation2 + $0x98] sm:$0xff]
    %v50 = vld [vmem:[#allocation2 + $0xa0] sm:$0xff]
    %v51 = vld [vmem:[#allocation2 + $0xa8] sm:$0xff]
    %v52 = vld [vmem:[#allocation2 + $0xb0] sm:$0xff]
    %v53 = vld [vmem:[#allocation2 + $0xb8] sm:$0xff]
    %v54 = vld [vmem:[#allocation2 + $0xc0] sm:$0xff]
    %v55 = vld [vmem:[#allocation2 + $0xc8] sm:$0xff]
    %v56 = vld [vmem:[#allocation2 + $0xd0] sm:$0xff]
    %v57 = vld [vmem:[#allocation2 + $0xd8] sm:$0xff]
    %v58 = vld [vmem:[#allocation2 + $0xe0] sm:$0xff]
    %v59 = vld [vmem:[#allocation2 + $0xe8] sm:$0xff]
    %v60 = vld [vmem:[#allocation2 + $0xf0] sm:$0xff]
    %v61 = vld [vmem:[#allocation2 + $0xf8] sm:$0xff]
    %v62 = vld [vmem:[%s2] sm:$0x3]
    %v64 = vlaneseq
    %v65 = vshrl.u32 %v64, 7
    %v66 = vsub.s32 0, %v65
    %v67 = vrot.slane %v62, %v66
    %v68 = vlaneseq
    %v69 = vshrl.u32 %v68, 7
    %v70 = vsub.s32 1, %v69
    %v71 = vrot.slane %v62, %v70
    %74 = vmatprep.subr.mxu0 %v31
    %75 = vmatpush1.msra.mxu0 %v30
    %76 = vmatprep.subr.mxu0 %v33
    %77 = vmatpush1.msra.mxu0 %v32
    %78 = vmatprep.subr.mxu0 %v35
    %79 = vmatpush1.msra.mxu0 %v34
    %80 = vmatprep.subr.mxu0 %v37
    %81 = vmatpush1.msra.mxu0 %v36
    %82 = vmatprep.subr.mxu0 %v39
    %83 = vmatpush1.msra.mxu0 %v38
    %84 = vmatprep.subr.mxu0 %v41
    %85 = vmatpush1.msra.mxu0 %v40
    %86 = vmatprep.subr.mxu0 %v43
    %87 = vmatpush1.msra.mxu0 %v42
    %88 = vmatprep.subr.mxu0 %v45
    %89 = vmatpush1.msra.mxu0 %v44
    %90 = vmatprep.subr.mxu0 %v47
    %91 = vmatpush1.msra.mxu0 %v46
    %92 = vmatprep.subr.mxu0 %v49
    %93 = vmatpush1.msra.mxu0 %v48
    %94 = vmatprep.subr.mxu0 %v51
    %95 = vmatpush1.msra.mxu0 %v50
    %96 = vmatprep.subr.mxu0 %v53
    %97 = vmatpush1.msra.mxu0 %v52
    %98 = vmatprep.subr.mxu0 %v55
    %99 = vmatpush1.msra.mxu0 %v54
    %100 = vmatprep.subr.mxu0 %v57
    %101 = vmatpush1.msra.mxu0 %v56
    %102 = vmatprep.subr.mxu0 %v59
    %103 = vmatpush1.msra.mxu0 %v58
    %104 = vmatprep.subr.mxu0 %v61
    %105 = vmatpush1.msra.mxu0 %v60
    %106 = vmatprep.subr.mxu0 0.0
    %107 = vmatpush1.msra.mxu0 0.0
    %108 = vmatprep.subr.mxu0 0.0
    %109 = vmatpush1.msra.mxu0 0.0
    %110 = vmatprep.subr.mxu0 0.0
    %111 = vmatpush1.msra.mxu0 0.0
    %112 = vmatprep.subr.mxu0 0.0
    %113 = vmatpush1.msra.mxu0 0.0
    %114 = vmatprep.subr.mxu0 0.0
    %115 = vmatpush1.msra.mxu0 0.0
    %116 = vmatprep.subr.mxu0 0.0
    %117 = vmatpush1.msra.mxu0 0.0
    %118 = vmatprep.subr.mxu0 0.0
    %119 = vmatpush1.msra.mxu0 0.0
    %120 = vmatprep.subr.mxu0 0.0
    %121 = vmatpush1.msra.mxu0 0.0
    %122 = vmatprep.subr.mxu0 0.0
    %123 = vmatpush1.msra.mxu0 0.0
    %124 = vmatprep.subr.mxu0 0.0
    %125 = vmatpush1.msra.mxu0 0.0
    %126 = vmatprep.subr.mxu0 0.0
    %127 = vmatpush1.msra.mxu0 0.0
    %128 = vmatprep.subr.mxu0 0.0
    %129 = vmatpush1.msra.mxu0 0.0
    %130 = vmatprep.subr.mxu0 0.0
    %131 = vmatpush1.msra.mxu0 0.0
    %132 = vmatprep.subr.mxu0 0.0
    %133 = vmatpush1.msra.mxu0 0.0
    %134 = vmatprep.subr.mxu0 0.0
    %135 = vmatpush1.msra.mxu0 0.0
    %136 = vmatprep.subr.mxu0 0.0
    %137 = vmatpush1.msra.mxu0 0.0
    %138 = vmatprep.mubr.f32.mxu0 0.0
    %139 = vmatmul.mubr.f32.gmra.mrb[0].mxu0 %v28
    %v140 = vpop.f32.mrb[0].mxu0
    %v141 = vadd.f32 %v67, %v140
    %v142 = vpop.f32.mrb[0].mxu0
    %v143 = vadd.f32 %v71, %v142
    %144 = vmatprep.mubr.f32.mxu0 0.0
    %145 = vmatmul.mubr.f32.gmra.mrb[0].mxu0 %v29
    %v146 = vpop.f32.mrb[0].mxu0
    %v147 = vadd.f32 %v67, %v146
    %v148 = vpop.f32.mrb[0].mxu0
    %v149 = vadd.f32 %v71, %v148
    %150 = vdwg.mxu0
    %v151 = vmul.f32 %v141, %v141
    %v152 = vmul.f32 %v143, %v143
    %v153 = vmul.f32 %v147, %v147
    %v154 = vmul.f32 %v149, %v149
    %v155 = vmul.f32 %v151, 0.035677407
    %v156 = vmul.f32 %v152, 0.035677407
    %v157 = vmul.f32 %v153, 0.035677407
    %v158 = vmul.f32 %v154, 0.035677407
    %v159 = vadd.f32 %v155, 0.7978846
    %v160 = vadd.f32 %v156, 0.7978846
    %v161 = vadd.f32 %v157, 0.7978846
    %v162 = vadd.f32 %v158, 0.7978846
    %v163 = vmul.f32 %v141, %v159
    %v164 = vmul.f32 %v143, %v160
    %v165 = vmul.f32 %v147, %v161
    %v166 = vmul.f32 %v149, %v162
    %v167 = vtanh.pop %v163
    %v168 = vtanh.pop %v164
    %v169 = vtanh.pop %v165
    %v170 = vtanh.pop %v166
    %v171 = vmul.f32 %v167, 0.5
    %v172 = vmul.f32 %v168, 0.5
    %v173 = vmul.f32 %v169, 0.5
    %v174 = vmul.f32 %v170, 0.5
    %v175 = vadd.f32 %v171, 0.5
    %v176 = vadd.f32 %v172, 0.5
    %v177 = vadd.f32 %v173, 0.5
    %v178 = vadd.f32 %v174, 0.5
    %v179 = vmul.f32 %v141, %v175
    %v180 = vmul.f32 %v143, %v176
    %v181 = vmul.f32 %v147, %v177
    %v182 = vmul.f32 %v149, %v178
    %183 = vst [vmem:[%s3] sm:$0xff] %v179
    %184 = vst [vmem:[%s3 + $0x8] sm:$0xff] %v180
    %185 = vst [vmem:[%s3 + $0x10] sm:$0xff] %v181
    %186 = vst [vmem:[%s3 + $0x18] sm:$0xff] %v182
    // Predicated region
    $region18: #{gelu_linear.1} parent=1 // pred_check
      _
    $region19: #{gelu_linear.1} parent=1 // pred_check_branch
      %188 = sbr.rel (0) target = $region21
    $region20: #{gelu_linear.1} parent=1 // pred_region
      _
    $region21: #{gelu_linear.1} parent=1 // pred_fallthru
      _
    // Predicated region
    $region22: #{gelu_linear.1} parent=1 // pred_check
      _
    $region23: #{gelu_linear.1} parent=1 // pred_check_branch
      %190 = sbr.rel (0) target = $region25
    $region24: #{gelu_linear.1} parent=1 // pred_region
      _
    $region25: #{gelu_linear.1} parent=1 // pred_fallthru
      _
    %191 = vsyncpa [#allocation3], 1

</llo_original>
